<compile_context>
chip_gen: v7x
topology: tpu7x:2x2x1
jax: 0.10.0
libtpu: 0.0.40
codegen_flags: <defaults>
</compile_context>

<pallas_src>
import jax
import jax.numpy as jnp
from jax.experimental import pallas as pl
from jax.experimental.pallas import tpu as pltpu


def _conv1x1_mlp_kernel(x_ref, w1_ref, b1_ref, w2_ref, b2_ref, o_ref):
    # x_ref : (N*C_in,  P) VMEM  (channels in sublanes, pixels in lanes)
    # o_ref : (N*C_out, P) VMEM
    # w1_ref: (C_in*C_in,)  SMEM flat, index [o*C_in + i]
    # w2_ref: (C_out*C_in,) SMEM flat, index [o*C_in + i]
    # b1_ref: (C_in,) SMEM,  b2_ref: (C_out,) SMEM
    C_in = b1_ref.shape[0]
    C_out = b2_ref.shape[0]
    P = x_ref.shape[-1]
    N = x_ref.shape[0] // C_in

    for n in range(N):  # tiny fully-unrolled batch loop (single grid step)
        # Load each input row once per batch element: (1, P) lane-dense vregs.
        x_rows = [
            x_ref[n * C_in + ci: n * C_in + ci + 1, :].astype(jnp.float32)
            for ci in range(C_in)
        ]

        # conv1 (1x1) + ReLU: SMEM-scalar x vector FMAs, bias folded into init.
        h_rows = []
        for o in range(C_in):
            acc = jnp.full((1, P), b1_ref[o], dtype=jnp.float32)
            for ci in range(C_in):
                acc = acc + w1_ref[o * C_in + ci] * x_rows[ci]
            h_rows.append(jnp.maximum(acc, 0.0))

        # conv2 (1x1): same structure, write each output row directly.
        for o in range(C_out):
            acc = jnp.full((1, P), b2_ref[o], dtype=jnp.float32)
            for ci in range(C_in):
                acc = acc + w2_ref[o * C_in + ci] * h_rows[ci]
            o_ref[n * C_out + o: n * C_out + o + 1, :] = acc.astype(o_ref.dtype)


def small_model_forward(x_nchw, w1, b1, w2, b2):
    """x_nchw: (N, C_in, H, W); w1: (C_in, C_in, 1, 1); w2: (C_out, C_in, 1, 1)."""
    N, C_in, H, W = x_nchw.shape
    C_out = w2.shape[0]
    P = H * W

    # Pure reshapes only -- no transposes, no HBM round-trips.
    x_rows = x_nchw.reshape(N * C_in, P)        # channels -> sublanes, pixels -> lanes
    w1_flat = w1.reshape(C_in * C_in)           # [o*C_in + i] = w1[o, i, 0, 0]
    w2_flat = w2.reshape(C_out * C_in)          # [o*C_in + i] = w2[o, i, 0, 0]

    out2d = pl.pallas_call(
        _conv1x1_mlp_kernel,
        out_shape=jax.ShapeDtypeStruct((N * C_out, P), x_nchw.dtype),
        in_specs=[
            pl.BlockSpec(memory_space=pltpu.MemorySpace.VMEM),   # x slab
            pl.BlockSpec(memory_space=pltpu.MemorySpace.SMEM),   # w1 (flat scalars)
            pl.BlockSpec(memory_space=pltpu.MemorySpace.SMEM),   # b1
            pl.BlockSpec(memory_space=pltpu.MemorySpace.SMEM),   # w2 (flat scalars)
            pl.BlockSpec(memory_space=pltpu.MemorySpace.SMEM),   # b2
        ],
        out_specs=pl.BlockSpec(memory_space=pltpu.MemorySpace.VMEM),
    )(x_rows, w1_flat, b1, w2_flat, b2)

    # (N*C_out, P) row-major == NCHW flatten order -> matches torch reshape(N, -1).
    return out2d.reshape(N, C_out * P)


def _reference(x_nchw, w1, b1, w2, b2):
    # plain-JAX reference of the same forward (for sanity check)
    h = jnp.einsum("nchw,oc->nohw", x_nchw, w1[:, :, 0, 0]) + b1[None, :, None, None]
    h = jnp.maximum(h, 0.0)
    y = jnp.einsum("nchw,oc->nohw", h, w2[:, :, 0, 0]) + b2[None, :, None, None]
    return y.reshape(y.shape[0], -1)


if __name__ == "__main__":
    N, C_in, C_out, H, W = 2, 4, 8, 16, 16

    key = jax.random.PRNGKey(0)
    k_x, k_w1, k_b1, k_w2, k_b2 = jax.random.split(key, 5)

    x = jax.random.normal(k_x, (N, C_in, H, W), dtype=jnp.float32)

    # deterministic param init (PyTorch-Conv2d-like uniform bounds for fan_in = C_in)
    bound1 = 1.0 / (C_in ** 0.5)
    w1 = jax.random.uniform(k_w1, (C_in, C_in, 1, 1), minval=-bound1, maxval=bound1)
    b1 = jax.random.uniform(k_b1, (C_in,), minval=-bound1, maxval=bound1)
    w2 = jax.random.uniform(k_w2, (C_out, C_in, 1, 1), minval=-bound1, maxval=bound1)
    b2 = jax.random.uniform(k_b2, (C_out,), minval=-bound1, maxval=bound1)

    out = small_model_forward(x, w1, b1, w2, b2)
    out = jax.block_until_ready(out)

    ref = _reference(x, w1, b1, w2, b2)
    assert out.shape == (N, C_out * H * W), out.shape
    assert jnp.allclose(out, ref, atol=1e-5, rtol=1e-5), "mismatch vs reference"

    print("KERNEL_OK")
</pallas_src>

<mosaic_0001>
module attributes {stable_mosaic.version = 11 : i64} {
  func.func @_conv1x1_mlp_kernel(%arg0: memref<8x256xf32, #tpu.memory_space<vmem>>, %arg1: memref<16xf32, #tpu.memory_space<smem>>, %arg2: memref<4xf32, #tpu.memory_space<smem>>, %arg3: memref<32xf32, #tpu.memory_space<smem>>, %arg4: memref<8xf32, #tpu.memory_space<smem>>, %arg5: memref<16x256xf32, #tpu.memory_space<vmem>>) attributes {dimension_semantics = [], scalar_prefetch = 0 : i64, scratch_operands = 0 : i64, tpu.core_type = #tpu.core_type<tc>} {
    %c0 = arith.constant 0 : index
    %c0_0 = arith.constant 0 : index
    %0 = vector.load %arg0[%c0, %c0_0] : memref<8x256xf32, #tpu.memory_space<vmem>>, vector<1x256xf32>
    %c1 = arith.constant 1 : index
    %c0_1 = arith.constant 0 : index
    %1 = vector.load %arg0[%c1, %c0_1] : memref<8x256xf32, #tpu.memory_space<vmem>>, vector<1x256xf32>
    %c2 = arith.constant 2 : index
    %c0_2 = arith.constant 0 : index
    %2 = vector.load %arg0[%c2, %c0_2] : memref<8x256xf32, #tpu.memory_space<vmem>>, vector<1x256xf32>
    %c3 = arith.constant 3 : index
    %c0_3 = arith.constant 0 : index
    %3 = vector.load %arg0[%c3, %c0_3] : memref<8x256xf32, #tpu.memory_space<vmem>>, vector<1x256xf32>
    %c0_4 = arith.constant 0 : index
    %4 = memref.load %arg2[%c0_4] : memref<4xf32, #tpu.memory_space<smem>>
    %5 = vector.broadcast %4 : f32 to vector<1x256xf32>
    %c0_5 = arith.constant 0 : index
    %6 = memref.load %arg1[%c0_5] : memref<16xf32, #tpu.memory_space<smem>>
    %7 = vector.broadcast %6 : f32 to vector<1x256xf32>
    %8 = arith.mulf %7, %0 : vector<1x256xf32>
    %9 = arith.addf %5, %8 : vector<1x256xf32>
    %c1_6 = arith.constant 1 : index
    %10 = memref.load %arg1[%c1_6] : memref<16xf32, #tpu.memory_space<smem>>
    %11 = vector.broadcast %10 : f32 to vector<1x256xf32>
    %12 = arith.mulf %11, %1 : vector<1x256xf32>
    %13 = arith.addf %9, %12 : vector<1x256xf32>
    %c2_7 = arith.constant 2 : index
    %14 = memref.load %arg1[%c2_7] : memref<16xf32, #tpu.memory_space<smem>>
    %15 = vector.broadcast %14 : f32 to vector<1x256xf32>
    %16 = arith.mulf %15, %2 : vector<1x256xf32>
    %17 = arith.addf %13, %16 : vector<1x256xf32>
    %c3_8 = arith.constant 3 : index
    %18 = memref.load %arg1[%c3_8] : memref<16xf32, #tpu.memory_space<smem>>
    %19 = vector.broadcast %18 : f32 to vector<1x256xf32>
    %20 = arith.mulf %19, %3 : vector<1x256xf32>
    %21 = arith.addf %17, %20 : vector<1x256xf32>
    %cst = arith.constant 0.000000e+00 : f32
    %22 = vector.broadcast %cst : f32 to vector<1x256xf32>
    %23 = arith.maximumf %21, %22 : vector<1x256xf32>
    %c1_9 = arith.constant 1 : index
    %24 = memref.load %arg2[%c1_9] : memref<4xf32, #tpu.memory_space<smem>>
    %25 = vector.broadcast %24 : f32 to vector<1x256xf32>
    %c4 = arith.constant 4 : index
    %26 = memref.load %arg1[%c4] : memref<16xf32, #tpu.memory_space<smem>>
    %27 = vector.broadcast %26 : f32 to vector<1x256xf32>
    %28 = arith.mulf %27, %0 : vector<1x256xf32>
    %29 = arith.addf %25, %28 : vector<1x256xf32>
    %c5 = arith.constant 5 : index
    %30 = memref.load %arg1[%c5] : memref<16xf32, #tpu.memory_space<smem>>
    %31 = vector.broadcast %30 : f32 to vector<1x256xf32>
    %32 = arith.mulf %31, %1 : vector<1x256xf32>
    %33 = arith.addf %29, %32 : vector<1x256xf32>
    %c6 = arith.constant 6 : index
    %34 = memref.load %arg1[%c6] : memref<16xf32, #tpu.memory_space<smem>>
    %35 = vector.broadcast %34 : f32 to vector<1x256xf32>
    %36 = arith.mulf %35, %2 : vector<1x256xf32>
    %37 = arith.addf %33, %36 : vector<1x256xf32>
    %c7 = arith.constant 7 : index
    %38 = memref.load %arg1[%c7] : memref<16xf32, #tpu.memory_space<smem>>
    %39 = vector.broadcast %38 : f32 to vector<1x256xf32>
    %40 = arith.mulf %39, %3 : vector<1x256xf32>
    %41 = arith.addf %37, %40 : vector<1x256xf32>
    %cst_10 = arith.constant 0.000000e+00 : f32
    %42 = vector.broadcast %cst_10 : f32 to vector<1x256xf32>
    %43 = arith.maximumf %41, %42 : vector<1x256xf32>
    %c2_11 = arith.constant 2 : index
    %44 = memref.load %arg2[%c2_11] : memref<4xf32, #tpu.memory_space<smem>>
    %45 = vector.broadcast %44 : f32 to vector<1x256xf32>
    %c8 = arith.constant 8 : index
    %46 = memref.load %arg1[%c8] : memref<16xf32, #tpu.memory_space<smem>>
    %47 = vector.broadcast %46 : f32 to vector<1x256xf32>
    %48 = arith.mulf %47, %0 : vector<1x256xf32>
    %49 = arith.addf %45, %48 : vector<1x256xf32>
    %c9 = arith.constant 9 : index
    %50 = memref.load %arg1[%c9] : memref<16xf32, #tpu.memory_space<smem>>
    %51 = vector.broadcast %50 : f32 to vector<1x256xf32>
    %52 = arith.mulf %51, %1 : vector<1x256xf32>
    %53 = arith.addf %49, %52 : vector<1x256xf32>
    %c10 = arith.constant 10 : index
    %54 = memref.load %arg1[%c10] : memref<16xf32, #tpu.memory_space<smem>>
    %55 = vector.broadcast %54 : f32 to vector<1x256xf32>
    %56 = arith.mulf %55, %2 : vector<1x256xf32>
    %57 = arith.addf %53, %56 : vector<1x256xf32>
    %c11 = arith.constant 11 : index
    %58 = memref.load %arg1[%c11] : memref<16xf32, #tpu.memory_space<smem>>
    %59 = vector.broadcast %58 : f32 to vector<1x256xf32>
    %60 = arith.mulf %59, %3 : vector<1x256xf32>
    %61 = arith.addf %57, %60 : vector<1x256xf32>
    %cst_12 = arith.constant 0.000000e+00 : f32
    %62 = vector.broadcast %cst_12 : f32 to vector<1x256xf32>
    %63 = arith.maximumf %61, %62 : vector<1x256xf32>
    %c3_13 = arith.constant 3 : index
    %64 = memref.load %arg2[%c3_13] : memref<4xf32, #tpu.memory_space<smem>>
    %65 = vector.broadcast %64 : f32 to vector<1x256xf32>
    %c12 = arith.constant 12 : index
    %66 = memref.load %arg1[%c12] : memref<16xf32, #tpu.memory_space<smem>>
    %67 = vector.broadcast %66 : f32 to vector<1x256xf32>
    %68 = arith.mulf %67, %0 : vector<1x256xf32>
    %69 = arith.addf %65, %68 : vector<1x256xf32>
    %c13 = arith.constant 13 : index
    %70 = memref.load %arg1[%c13] : memref<16xf32, #tpu.memory_space<smem>>
    %71 = vector.broadcast %70 : f32 to vector<1x256xf32>
    %72 = arith.mulf %71, %1 : vector<1x256xf32>
    %73 = arith.addf %69, %72 : vector<1x256xf32>
    %c14 = arith.constant 14 : index
    %74 = memref.load %arg1[%c14] : memref<16xf32, #tpu.memory_space<smem>>
    %75 = vector.broadcast %74 : f32 to vector<1x256xf32>
    %76 = arith.mulf %75, %2 : vector<1x256xf32>
    %77 = arith.addf %73, %76 : vector<1x256xf32>
    %c15 = arith.constant 15 : index
    %78 = memref.load %arg1[%c15] : memref<16xf32, #tpu.memory_space<smem>>
    %79 = vector.broadcast %78 : f32 to vector<1x256xf32>
    %80 = arith.mulf %79, %3 : vector<1x256xf32>
    %81 = arith.addf %77, %80 : vector<1x256xf32>
    %cst_14 = arith.constant 0.000000e+00 : f32
    %82 = vector.broadcast %cst_14 : f32 to vector<1x256xf32>
    %83 = arith.maximumf %81, %82 : vector<1x256xf32>
    %c0_15 = arith.constant 0 : index
    %84 = memref.load %arg4[%c0_15] : memref<8xf32, #tpu.memory_space<smem>>
    %85 = vector.broadcast %84 : f32 to vector<1x256xf32>
    %c0_16 = arith.constant 0 : index
    %86 = memref.load %arg3[%c0_16] : memref<32xf32, #tpu.memory_space<smem>>
    %87 = vector.broadcast %86 : f32 to vector<1x256xf32>
    %88 = arith.mulf %87, %23 : vector<1x256xf32>
    %89 = arith.addf %85, %88 : vector<1x256xf32>
    %c1_17 = arith.constant 1 : index
    %90 = memref.load %arg3[%c1_17] : memref<32xf32, #tpu.memory_space<smem>>
    %91 = vector.broadcast %90 : f32 to vector<1x256xf32>
    %92 = arith.mulf %91, %43 : vector<1x256xf32>
    %93 = arith.addf %89, %92 : vector<1x256xf32>
    %c2_18 = arith.constant 2 : index
    %94 = memref.load %arg3[%c2_18] : memref<32xf32, #tpu.memory_space<smem>>
    %95 = vector.broadcast %94 : f32 to vector<1x256xf32>
    %96 = arith.mulf %95, %63 : vector<1x256xf32>
    %97 = arith.addf %93, %96 : vector<1x256xf32>
    %c3_19 = arith.constant 3 : index
    %98 = memref.load %arg3[%c3_19] : memref<32xf32, #tpu.memory_space<smem>>
    %99 = vector.broadcast %98 : f32 to vector<1x256xf32>
    %100 = arith.mulf %99, %83 : vector<1x256xf32>
    %101 = arith.addf %97, %100 : vector<1x256xf32>
    %c0_20 = arith.constant 0 : index
    %c0_21 = arith.constant 0 : index
    %102 = vector.load %arg5[%c0_20, %c0_21] : memref<16x256xf32, #tpu.memory_space<vmem>>, vector<1x256xf32>
    tpu.vector_store %arg5[%c0_20, %c0_21], %101 {strides = array<i32>} : memref<16x256xf32, #tpu.memory_space<vmem>>, vector<1x256xf32>,
    %c1_22 = arith.constant 1 : index
    %103 = memref.load %arg4[%c1_22] : memref<8xf32, #tpu.memory_space<smem>>
    %104 = vector.broadcast %103 : f32 to vector<1x256xf32>
    %c4_23 = arith.constant 4 : index
    %105 = memref.load %arg3[%c4_23] : memref<32xf32, #tpu.memory_space<smem>>
    %106 = vector.broadcast %105 : f32 to vector<1x256xf32>
    %107 = arith.mulf %106, %23 : vector<1x256xf32>
    %108 = arith.addf %104, %107 : vector<1x256xf32>
    %c5_24 = arith.constant 5 : index
    %109 = memref.load %arg3[%c5_24] : memref<32xf32, #tpu.memory_space<smem>>
    %110 = vector.broadcast %109 : f32 to vector<1x256xf32>
    %111 = arith.mulf %110, %43 : vector<1x256xf32>
    %112 = arith.addf %108, %111 : vector<1x256xf32>
    %c6_25 = arith.constant 6 : index
    %113 = memref.load %arg3[%c6_25] : memref<32xf32, #tpu.memory_space<smem>>
    %114 = vector.broadcast %113 : f32 to vector<1x256xf32>
    %115 = arith.mulf %114, %63 : vector<1x256xf32>
    %116 = arith.addf %112, %115 : vector<1x256xf32>
    %c7_26 = arith.constant 7 : index
    %117 = memref.load %arg3[%c7_26] : memref<32xf32, #tpu.memory_space<smem>>
    %118 = vector.broadcast %117 : f32 to vector<1x256xf32>
    %119 = arith.mulf %118, %83 : vector<1x256xf32>
    %120 = arith.addf %116, %119 : vector<1x256xf32>
    %c1_27 = arith.constant 1 : index
    %c0_28 = arith.constant 0 : index
    %121 = vector.load %arg5[%c1_27, %c0_28] : memref<16x256xf32, #tpu.memory_space<vmem>>, vector<1x256xf32>
    tpu.vector_store %arg5[%c1_27, %c0_28], %120 {strides = array<i32>} : memref<16x256xf32, #tpu.memory_space<vmem>>, vector<1x256xf32>,
    %c2_29 = arith.constant 2 : index
    %122 = memref.load %arg4[%c2_29] : memref<8xf32, #tpu.memory_space<smem>>
    %123 = vector.broadcast %122 : f32 to vector<1x256xf32>
    %c8_30 = arith.constant 8 : index
    %124 = memref.load %arg3[%c8_30] : memref<32xf32, #tpu.memory_space<smem>>
    %125 = vector.broadcast %124 : f32 to vector<1x256xf32>
    %126 = arith.mulf %125, %23 : vector<1x256xf32>
    %127 = arith.addf %123, %126 : vector<1x256xf32>
    %c9_31 = arith.constant 9 : index
    %128 = memref.load %arg3[%c9_31] : memref<32xf32, #tpu.memory_space<smem>>
    %129 = vector.broadcast %128 : f32 to vector<1x256xf32>
    %130 = arith.mulf %129, %43 : vector<1x256xf32>
    %131 = arith.addf %127, %130 : vector<1x256xf32>
    %c10_32 = arith.constant 10 : index
    %132 = memref.load %arg3[%c10_32] : memref<32xf32, #tpu.memory_space<smem>>
    %133 = vector.broadcast %132 : f32 to vector<1x256xf32>
    %134 = arith.mulf %133, %63 : vector<1x256xf32>
    %135 = arith.addf %131, %134 : vector<1x256xf32>
    %c11_33 = arith.constant 11 : index
    %136 = memref.load %arg3[%c11_33] : memref<32xf32, #tpu.memory_space<smem>>
    %137 = vector.broadcast %136 : f32 to vector<1x256xf32>
    %138 = arith.mulf %137, %83 : vector<1x256xf32>
    %139 = arith.addf %135, %138 : vector<1x256xf32>
    %c2_34 = arith.constant 2 : index
    %c0_35 = arith.constant 0 : index
    %140 = vector.load %arg5[%c2_34, %c0_35] : memref<16x256xf32, #tpu.memory_space<vmem>>, vector<1x256xf32>
    tpu.vector_store %arg5[%c2_34, %c0_35], %139 {strides = array<i32>} : memref<16x256xf32, #tpu.memory_space<vmem>>, vector<1x256xf32>,
    %c3_36 = arith.constant 3 : index
    %141 = memref.load %arg4[%c3_36] : memref<8xf32, #tpu.memory_space<smem>>
    %142 = vector.broadcast %141 : f32 to vector<1x256xf32>
    %c12_37 = arith.constant 12 : index
    %143 = memref.load %arg3[%c12_37] : memref<32xf32, #tpu.memory_space<smem>>
    %144 = vector.broadcast %143 : f32 to vector<1x256xf32>
    %145 = arith.mulf %144, %23 : vector<1x256xf32>
    %146 = arith.addf %142, %145 : vector<1x256xf32>
    %c13_38 = arith.constant 13 : index
    %147 = memref.load %arg3[%c13_38] : memref<32xf32, #tpu.memory_space<smem>>
    %148 = vector.broadcast %147 : f32 to vector<1x256xf32>
    %149 = arith.mulf %148, %43 : vector<1x256xf32>
    %150 = arith.addf %146, %149 : vector<1x256xf32>
    %c14_39 = arith.constant 14 : index
    %151 = memref.load %arg3[%c14_39] : memref<32xf32, #tpu.memory_space<smem>>
    %152 = vector.broadcast %151 : f32 to vector<1x256xf32>
    %153 = arith.mulf %152, %63 : vector<1x256xf32>
    %154 = arith.addf %150, %153 : vector<1x256xf32>
    %c15_40 = arith.constant 15 : index
    %155 = memref.load %arg3[%c15_40] : memref<32xf32, #tpu.memory_space<smem>>
    %156 = vector.broadcast %155 : f32 to vector<1x256xf32>
    %157 = arith.mulf %156, %83 : vector<1x256xf32>
    %158 = arith.addf %154, %157 : vector<1x256xf32>
    %c3_41 = arith.constant 3 : index
    %c0_42 = arith.constant 0 : index
    %159 = vector.load %arg5[%c3_41, %c0_42] : memref<16x256xf32, #tpu.memory_space<vmem>>, vector<1x256xf32>
    tpu.vector_store %arg5[%c3_41, %c0_42], %158 {strides = array<i32>} : memref<16x256xf32, #tpu.memory_space<vmem>>, vector<1x256xf32>,
    %c4_43 = arith.constant 4 : index
    %160 = memref.load %arg4[%c4_43] : memref<8xf32, #tpu.memory_space<smem>>
    %161 = vector.broadcast %160 : f32 to vector<1x256xf32>
    %c16 = arith.constant 16 : index
    %162 = memref.load %arg3[%c16] : memref<32xf32, #tpu.memory_space<smem>>
    %163 = vector.broadcast %162 : f32 to vector<1x256xf32>
    %164 = arith.mulf %163, %23 : vector<1x256xf32>
    %165 = arith.addf %161, %164 : vector<1x256xf32>
    %c17 = arith.constant 17 : index
    %166 = memref.load %arg3[%c17] : memref<32xf32, #tpu.memory_space<smem>>
    %167 = vector.broadcast %166 : f32 to vector<1x256xf32>
    %168 = arith.mulf %167, %43 : vector<1x256xf32>
    %169 = arith.addf %165, %168 : vector<1x256xf32>
    %c18 = arith.constant 18 : index
    %170 = memref.load %arg3[%c18] : memref<32xf32, #tpu.memory_space<smem>>
    %171 = vector.broadcast %170 : f32 to vector<1x256xf32>
    %172 = arith.mulf %171, %63 : vector<1x256xf32>
    %173 = arith.addf %169, %172 : vector<1x256xf32>
    %c19 = arith.constant 19 : index
    %174 = memref.load %arg3[%c19] : memref<32xf32, #tpu.memory_space<smem>>
    %175 = vector.broadcast %174 : f32 to vector<1x256xf32>
    %176 = arith.mulf %175, %83 : vector<1x256xf32>
    %177 = arith.addf %173, %176 : vector<1x256xf32>
    %c4_44 = arith.constant 4 : index
    %c0_45 = arith.constant 0 : index
    %178 = vector.load %arg5[%c4_44, %c0_45] : memref<16x256xf32, #tpu.memory_space<vmem>>, vector<1x256xf32>
    tpu.vector_store %arg5[%c4_44, %c0_45], %177 {strides = array<i32>} : memref<16x256xf32, #tpu.memory_space<vmem>>, vector<1x256xf32>,
    %c5_46 = arith.constant 5 : index
    %179 = memref.load %arg4[%c5_46] : memref<8xf32, #tpu.memory_space<smem>>
    %180 = vector.broadcast %179 : f32 to vector<1x256xf32>
    %c20 = arith.constant 20 : index
    %181 = memref.load %arg3[%c20] : memref<32xf32, #tpu.memory_space<smem>>
    %182 = vector.broadcast %181 : f32 to vector<1x256xf32>
    %183 = arith.mulf %182, %23 : vector<1x256xf32>
    %184 = arith.addf %180, %183 : vector<1x256xf32>
    %c21 = arith.constant 21 : index
    %185 = memref.load %arg3[%c21] : memref<32xf32, #tpu.memory_space<smem>>
    %186 = vector.broadcast %185 : f32 to vector<1x256xf32>
    %187 = arith.mulf %186, %43 : vector<1x256xf32>
    %188 = arith.addf %184, %187 : vector<1x256xf32>
    %c22 = arith.constant 22 : index
    %189 = memref.load %arg3[%c22] : memref<32xf32, #tpu.memory_space<smem>>
    %190 = vector.broadcast %189 : f32 to vector<1x256xf32>
    %191 = arith.mulf %190, %63 : vector<1x256xf32>
    %192 = arith.addf %188, %191 : vector<1x256xf32>
    %c23 = arith.constant 23 : index
    %193 = memref.load %arg3[%c23] : memref<32xf32, #tpu.memory_space<smem>>
    %194 = vector.broadcast %193 : f32 to vector<1x256xf32>
    %195 = arith.mulf %194, %83 : vector<1x256xf32>
    %196 = arith.addf %192, %195 : vector<1x256xf32>
    %c5_47 = arith.constant 5 : index
    %c0_48 = arith.constant 0 : index
    %197 = vector.load %arg5[%c5_47, %c0_48] : memref<16x256xf32, #tpu.memory_space<vmem>>, vector<1x256xf32>
    tpu.vector_store %arg5[%c5_47, %c0_48], %196 {strides = array<i32>} : memref<16x256xf32, #tpu.memory_space<vmem>>, vector<1x256xf32>,
    %c6_49 = arith.constant 6 : index
    %198 = memref.load %arg4[%c6_49] : memref<8xf32, #tpu.memory_space<smem>>
    %199 = vector.broadcast %198 : f32 to vector<1x256xf32>
    %c24 = arith.constant 24 : index
    %200 = memref.load %arg3[%c24] : memref<32xf32, #tpu.memory_space<smem>>
    %201 = vector.broadcast %200 : f32 to vector<1x256xf32>
    %202 = arith.mulf %201, %23 : vector<1x256xf32>
    %203 = arith.addf %199, %202 : vector<1x256xf32>
    %c25 = arith.constant 25 : index
    %204 = memref.load %arg3[%c25] : memref<32xf32, #tpu.memory_space<smem>>
    %205 = vector.broadcast %204 : f32 to vector<1x256xf32>
    %206 = arith.mulf %205, %43 : vector<1x256xf32>
    %207 = arith.addf %203, %206 : vector<1x256xf32>
    %c26 = arith.constant 26 : index
    %208 = memref.load %arg3[%c26] : memref<32xf32, #tpu.memory_space<smem>>
    %209 = vector.broadcast %208 : f32 to vector<1x256xf32>
    %210 = arith.mulf %209, %63 : vector<1x256xf32>
    %211 = arith.addf %207, %210 : vector<1x256xf32>
    %c27 = arith.constant 27 : index
    %212 = memref.load %arg3[%c27] : memref<32xf32, #tpu.memory_space<smem>>
    %213 = vector.broadcast %212 : f32 to vector<1x256xf32>
    %214 = arith.mulf %213, %83 : vector<1x256xf32>
    %215 = arith.addf %211, %214 : vector<1x256xf32>
    %c6_50 = arith.constant 6 : index
    %c0_51 = arith.constant 0 : index
    %216 = vector.load %arg5[%c6_50, %c0_51] : memref<16x256xf32, #tpu.memory_space<vmem>>, vector<1x256xf32>
    tpu.vector_store %arg5[%c6_50, %c0_51], %215 {strides = array<i32>} : memref<16x256xf32, #tpu.memory_space<vmem>>, vector<1x256xf32>,
    %c7_52 = arith.constant 7 : index
    %217 = memref.load %arg4[%c7_52] : memref<8xf32, #tpu.memory_space<smem>>
    %218 = vector.broadcast %217 : f32 to vector<1x256xf32>
    %c28 = arith.constant 28 : index
    %219 = memref.load %arg3[%c28] : memref<32xf32, #tpu.memory_space<smem>>
    %220 = vector.broadcast %219 : f32 to vector<1x256xf32>
    %221 = arith.mulf %220, %23 : vector<1x256xf32>
    %222 = arith.addf %218, %221 : vector<1x256xf32>
    %c29 = arith.constant 29 : index
    %223 = memref.load %arg3[%c29] : memref<32xf32, #tpu.memory_space<smem>>
    %224 = vector.broadcast %223 : f32 to vector<1x256xf32>
    %225 = arith.mulf %224, %43 : vector<1x256xf32>
    %226 = arith.addf %222, %225 : vector<1x256xf32>
    %c30 = arith.constant 30 : index
    %227 = memref.load %arg3[%c30] : memref<32xf32, #tpu.memory_space<smem>>
    %228 = vector.broadcast %227 : f32 to vector<1x256xf32>
    %229 = arith.mulf %228, %63 : vector<1x256xf32>
    %230 = arith.addf %226, %229 : vector<1x256xf32>
    %c31 = arith.constant 31 : index
    %231 = memref.load %arg3[%c31] : memref<32xf32, #tpu.memory_space<smem>>
    %232 = vector.broadcast %231 : f32 to vector<1x256xf32>
    %233 = arith.mulf %232, %83 : vector<1x256xf32>
    %234 = arith.addf %230, %233 : vector<1x256xf32>
    %c7_53 = arith.constant 7 : index
    %c0_54 = arith.constant 0 : index
    %235 = vector.load %arg5[%c7_53, %c0_54] : memref<16x256xf32, #tpu.memory_space<vmem>>, vector<1x256xf32>
    tpu.vector_store %arg5[%c7_53, %c0_54], %234 {strides = array<i32>} : memref<16x256xf32, #tpu.memory_space<vmem>>, vector<1x256xf32>,
    %c4_55 = arith.constant 4 : index
    %c0_56 = arith.constant 0 : index
    %236 = vector.load %arg0[%c4_55, %c0_56] : memref<8x256xf32, #tpu.memory_space<vmem>>, vector<1x256xf32>
    %c5_57 = arith.constant 5 : index
    %c0_58 = arith.constant 0 : index
    %237 = vector.load %arg0[%c5_57, %c0_58] : memref<8x256xf32, #tpu.memory_space<vmem>>, vector<1x256xf32>
    %c6_59 = arith.constant 6 : index
    %c0_60 = arith.constant 0 : index
    %238 = vector.load %arg0[%c6_59, %c0_60] : memref<8x256xf32, #tpu.memory_space<vmem>>, vector<1x256xf32>
    %c7_61 = arith.constant 7 : index
    %c0_62 = arith.constant 0 : index
    %239 = vector.load %arg0[%c7_61, %c0_62] : memref<8x256xf32, #tpu.memory_space<vmem>>, vector<1x256xf32>
    %c0_63 = arith.constant 0 : index
    %240 = memref.load %arg2[%c0_63] : memref<4xf32, #tpu.memory_space<smem>>
    %241 = vector.broadcast %240 : f32 to vector<1x256xf32>
    %c0_64 = arith.constant 0 : index
    %242 = memref.load %arg1[%c0_64] : memref<16xf32, #tpu.memory_space<smem>>
    %243 = vector.broadcast %242 : f32 to vector<1x256xf32>
    %244 = arith.mulf %243, %236 : vector<1x256xf32>
    %245 = arith.addf %241, %244 : vector<1x256xf32>
    %c1_65 = arith.constant 1 : index
    %246 = memref.load %arg1[%c1_65] : memref<16xf32, #tpu.memory_space<smem>>
    %247 = vector.broadcast %246 : f32 to vector<1x256xf32>
    %248 = arith.mulf %247, %237 : vector<1x256xf32>
    %249 = arith.addf %245, %248 : vector<1x256xf32>
    %c2_66 = arith.constant 2 : index
    %250 = memref.load %arg1[%c2_66] : memref<16xf32, #tpu.memory_space<smem>>
    %251 = vector.broadcast %250 : f32 to vector<1x256xf32>
    %252 = arith.mulf %251, %238 : vector<1x256xf32>
    %253 = arith.addf %249, %252 : vector<1x256xf32>
    %c3_67 = arith.constant 3 : index
    %254 = memref.load %arg1[%c3_67] : memref<16xf32, #tpu.memory_space<smem>>
    %255 = vector.broadcast %254 : f32 to vector<1x256xf32>
    %256 = arith.mulf %255, %239 : vector<1x256xf32>
    %257 = arith.addf %253, %256 : vector<1x256xf32>
    %cst_68 = arith.constant 0.000000e+00 : f32
    %258 = vector.broadcast %cst_68 : f32 to vector<1x256xf32>
    %259 = arith.maximumf %257, %258 : vector<1x256xf32>
    %c1_69 = arith.constant 1 : index
    %260 = memref.load %arg2[%c1_69] : memref<4xf32, #tpu.memory_space<smem>>
    %261 = vector.broadcast %260 : f32 to vector<1x256xf32>
    %c4_70 = arith.constant 4 : index
    %262 = memref.load %arg1[%c4_70] : memref<16xf32, #tpu.memory_space<smem>>
    %263 = vector.broadcast %262 : f32 to vector<1x256xf32>
    %264 = arith.mulf %263, %236 : vector<1x256xf32>
    %265 = arith.addf %261, %264 : vector<1x256xf32>
    %c5_71 = arith.constant 5 : index
    %266 = memref.load %arg1[%c5_71] : memref<16xf32, #tpu.memory_space<smem>>
    %267 = vector.broadcast %266 : f32 to vector<1x256xf32>
    %268 = arith.mulf %267, %237 : vector<1x256xf32>
    %269 = arith.addf %265, %268 : vector<1x256xf32>
    %c6_72 = arith.constant 6 : index
    %270 = memref.load %arg1[%c6_72] : memref<16xf32, #tpu.memory_space<smem>>
    %271 = vector.broadcast %270 : f32 to vector<1x256xf32>
    %272 = arith.mulf %271, %238 : vector<1x256xf32>
    %273 = arith.addf %269, %272 : vector<1x256xf32>
    %c7_73 = arith.constant 7 : index
    %274 = memref.load %arg1[%c7_73] : memref<16xf32, #tpu.memory_space<smem>>
    %275 = vector.broadcast %274 : f32 to vector<1x256xf32>
    %276 = arith.mulf %275, %239 : vector<1x256xf32>
    %277 = arith.addf %273, %276 : vector<1x256xf32>
    %cst_74 = arith.constant 0.000000e+00 : f32
    %278 = vector.broadcast %cst_74 : f32 to vector<1x256xf32>
    %279 = arith.maximumf %277, %278 : vector<1x256xf32>
    %c2_75 = arith.constant 2 : index
    %280 = memref.load %arg2[%c2_75] : memref<4xf32, #tpu.memory_space<smem>>
    %281 = vector.broadcast %280 : f32 to vector<1x256xf32>
    %c8_76 = arith.constant 8 : index
    %282 = memref.load %arg1[%c8_76] : memref<16xf32, #tpu.memory_space<smem>>
    %283 = vector.broadcast %282 : f32 to vector<1x256xf32>
    %284 = arith.mulf %283, %236 : vector<1x256xf32>
    %285 = arith.addf %281, %284 : vector<1x256xf32>
    %c9_77 = arith.constant 9 : index
    %286 = memref.load %arg1[%c9_77] : memref<16xf32, #tpu.memory_space<smem>>
    %287 = vector.broadcast %286 : f32 to vector<1x256xf32>
    %288 = arith.mulf %287, %237 : vector<1x256xf32>
    %289 = arith.addf %285, %288 : vector<1x256xf32>
    %c10_78 = arith.constant 10 : index
    %290 = memref.load %arg1[%c10_78] : memref<16xf32, #tpu.memory_space<smem>>
    %291 = vector.broadcast %290 : f32 to vector<1x256xf32>
    %292 = arith.mulf %291, %238 : vector<1x256xf32>
    %293 = arith.addf %289, %292 : vector<1x256xf32>
    %c11_79 = arith.constant 11 : index
    %294 = memref.load %arg1[%c11_79] : memref<16xf32, #tpu.memory_space<smem>>
    %295 = vector.broadcast %294 : f32 to vector<1x256xf32>
    %296 = arith.mulf %295, %239 : vector<1x256xf32>
    %297 = arith.addf %293, %296 : vector<1x256xf32>
    %cst_80 = arith.constant 0.000000e+00 : f32
    %298 = vector.broadcast %cst_80 : f32 to vector<1x256xf32>
    %299 = arith.maximumf %297, %298 : vector<1x256xf32>
    %c3_81 = arith.constant 3 : index
    %300 = memref.load %arg2[%c3_81] : memref<4xf32, #tpu.memory_space<smem>>
    %301 = vector.broadcast %300 : f32 to vector<1x256xf32>
    %c12_82 = arith.constant 12 : index
    %302 = memref.load %arg1[%c12_82] : memref<16xf32, #tpu.memory_space<smem>>
    %303 = vector.broadcast %302 : f32 to vector<1x256xf32>
    %304 = arith.mulf %303, %236 : vector<1x256xf32>
    %305 = arith.addf %301, %304 : vector<1x256xf32>
    %c13_83 = arith.constant 13 : index
    %306 = memref.load %arg1[%c13_83] : memref<16xf32, #tpu.memory_space<smem>>
    %307 = vector.broadcast %306 : f32 to vector<1x256xf32>
    %308 = arith.mulf %307, %237 : vector<1x256xf32>
    %309 = arith.addf %305, %308 : vector<1x256xf32>
    %c14_84 = arith.constant 14 : index
    %310 = memref.load %arg1[%c14_84] : memref<16xf32, #tpu.memory_space<smem>>
    %311 = vector.broadcast %310 : f32 to vector<1x256xf32>
    %312 = arith.mulf %311, %238 : vector<1x256xf32>
    %313 = arith.addf %309, %312 : vector<1x256xf32>
    %c15_85 = arith.constant 15 : index
    %314 = memref.load %arg1[%c15_85] : memref<16xf32, #tpu.memory_space<smem>>
    %315 = vector.broadcast %314 : f32 to vector<1x256xf32>
    %316 = arith.mulf %315, %239 : vector<1x256xf32>
    %317 = arith.addf %313, %316 : vector<1x256xf32>
    %cst_86 = arith.constant 0.000000e+00 : f32
    %318 = vector.broadcast %cst_86 : f32 to vector<1x256xf32>
    %319 = arith.maximumf %317, %318 : vector<1x256xf32>
    %c0_87 = arith.constant 0 : index
    %320 = memref.load %arg4[%c0_87] : memref<8xf32, #tpu.memory_space<smem>>
    %321 = vector.broadcast %320 : f32 to vector<1x256xf32>
    %c0_88 = arith.constant 0 : index
    %322 = memref.load %arg3[%c0_88] : memref<32xf32, #tpu.memory_space<smem>>
    %323 = vector.broadcast %322 : f32 to vector<1x256xf32>
    %324 = arith.mulf %323, %259 : vector<1x256xf32>
    %325 = arith.addf %321, %324 : vector<1x256xf32>
    %c1_89 = arith.constant 1 : index
    %326 = memref.load %arg3[%c1_89] : memref<32xf32, #tpu.memory_space<smem>>
    %327 = vector.broadcast %326 : f32 to vector<1x256xf32>
    %328 = arith.mulf %327, %279 : vector<1x256xf32>
    %329 = arith.addf %325, %328 : vector<1x256xf32>
    %c2_90 = arith.constant 2 : index
    %330 = memref.load %arg3[%c2_90] : memref<32xf32, #tpu.memory_space<smem>>
    %331 = vector.broadcast %330 : f32 to vector<1x256xf32>
    %332 = arith.mulf %331, %299 : vector<1x256xf32>
    %333 = arith.addf %329, %332 : vector<1x256xf32>
    %c3_91 = arith.constant 3 : index
    %334 = memref.load %arg3[%c3_91] : memref<32xf32, #tpu.memory_space<smem>>
    %335 = vector.broadcast %334 : f32 to vector<1x256xf32>
    %336 = arith.mulf %335, %319 : vector<1x256xf32>
    %337 = arith.addf %333, %336 : vector<1x256xf32>
    %c8_92 = arith.constant 8 : index
    %c0_93 = arith.constant 0 : index
    %338 = vector.load %arg5[%c8_92, %c0_93] : memref<16x256xf32, #tpu.memory_space<vmem>>, vector<1x256xf32>
    tpu.vector_store %arg5[%c8_92, %c0_93], %337 {strides = array<i32>} : memref<16x256xf32, #tpu.memory_space<vmem>>, vector<1x256xf32>,
    %c1_94 = arith.constant 1 : index
    %339 = memref.load %arg4[%c1_94] : memref<8xf32, #tpu.memory_space<smem>>
    %340 = vector.broadcast %339 : f32 to vector<1x256xf32>
    %c4_95 = arith.constant 4 : index
    %341 = memref.load %arg3[%c4_95] : memref<32xf32, #tpu.memory_space<smem>>
    %342 = vector.broadcast %341 : f32 to vector<1x256xf32>
    %343 = arith.mulf %342, %259 : vector<1x256xf32>
    %344 = arith.addf %340, %343 : vector<1x256xf32>
    %c5_96 = arith.constant 5 : index
    %345 = memref.load %arg3[%c5_96] : memref<32xf32, #tpu.memory_space<smem>>
    %346 = vector.broadcast %345 : f32 to vector<1x256xf32>
    %347 = arith.mulf %346, %279 : vector<1x256xf32>
    %348 = arith.addf %344, %347 : vector<1x256xf32>
    %c6_97 = arith.constant 6 : index
    %349 = memref.load %arg3[%c6_97] : memref<32xf32, #tpu.memory_space<smem>>
    %350 = vector.broadcast %349 : f32 to vector<1x256xf32>
    %351 = arith.mulf %350, %299 : vector<1x256xf32>
    %352 = arith.addf %348, %351 : vector<1x256xf32>
    %c7_98 = arith.constant 7 : index
    %353 = memref.load %arg3[%c7_98] : memref<32xf32, #tpu.memory_space<smem>>
    %354 = vector.broadcast %353 : f32 to vector<1x256xf32>
    %355 = arith.mulf %354, %319 : vector<1x256xf32>
    %356 = arith.addf %352, %355 : vector<1x256xf32>
    %c9_99 = arith.constant 9 : index
    %c0_100 = arith.constant 0 : index
    %357 = vector.load %arg5[%c9_99, %c0_100] : memref<16x256xf32, #tpu.memory_space<vmem>>, vector<1x256xf32>
    tpu.vector_store %arg5[%c9_99, %c0_100], %356 {strides = array<i32>} : memref<16x256xf32, #tpu.memory_space<vmem>>, vector<1x256xf32>,
    %c2_101 = arith.constant 2 : index
    %358 = memref.load %arg4[%c2_101] : memref<8xf32, #tpu.memory_space<smem>>
    %359 = vector.broadcast %358 : f32 to vector<1x256xf32>
    %c8_102 = arith.constant 8 : index
    %360 = memref.load %arg3[%c8_102] : memref<32xf32, #tpu.memory_space<smem>>
    %361 = vector.broadcast %360 : f32 to vector<1x256xf32>
    %362 = arith.mulf %361, %259 : vector<1x256xf32>
    %363 = arith.addf %359, %362 : vector<1x256xf32>
    %c9_103 = arith.constant 9 : index
    %364 = memref.load %arg3[%c9_103] : memref<32xf32, #tpu.memory_space<smem>>
    %365 = vector.broadcast %364 : f32 to vector<1x256xf32>
    %366 = arith.mulf %365, %279 : vector<1x256xf32>
    %367 = arith.addf %363, %366 : vector<1x256xf32>
    %c10_104 = arith.constant 10 : index
    %368 = memref.load %arg3[%c10_104] : memref<32xf32, #tpu.memory_space<smem>>
    %369 = vector.broadcast %368 : f32 to vector<1x256xf32>
    %370 = arith.mulf %369, %299 : vector<1x256xf32>
    %371 = arith.addf %367, %370 : vector<1x256xf32>
    %c11_105 = arith.constant 11 : index
    %372 = memref.load %arg3[%c11_105] : memref<32xf32, #tpu.memory_space<smem>>
    %373 = vector.broadcast %372 : f32 to vector<1x256xf32>
    %374 = arith.mulf %373, %319 : vector<1x256xf32>
    %375 = arith.addf %371, %374 : vector<1x256xf32>
    %c10_106 = arith.constant 10 : index
    %c0_107 = arith.constant 0 : index
    %376 = vector.load %arg5[%c10_106, %c0_107] : memref<16x256xf32, #tpu.memory_space<vmem>>, vector<1x256xf32>
    tpu.vector_store %arg5[%c10_106, %c0_107], %375 {strides = array<i32>} : memref<16x256xf32, #tpu.memory_space<vmem>>, vector<1x256xf32>,
    %c3_108 = arith.constant 3 : index
    %377 = memref.load %arg4[%c3_108] : memref<8xf32, #tpu.memory_space<smem>>
    %378 = vector.broadcast %377 : f32 to vector<1x256xf32>
    %c12_109 = arith.constant 12 : index
    %379 = memref.load %arg3[%c12_109] : memref<32xf32, #tpu.memory_space<smem>>
    %380 = vector.broadcast %379 : f32 to vector<1x256xf32>
    %381 = arith.mulf %380, %259 : vector<1x256xf32>
    %382 = arith.addf %378, %381 : vector<1x256xf32>
    %c13_110 = arith.constant 13 : index
    %383 = memref.load %arg3[%c13_110] : memref<32xf32, #tpu.memory_space<smem>>
    %384 = vector.broadcast %383 : f32 to vector<1x256xf32>
    %385 = arith.mulf %384, %279 : vector<1x256xf32>
    %386 = arith.addf %382, %385 : vector<1x256xf32>
    %c14_111 = arith.constant 14 : index
    %387 = memref.load %arg3[%c14_111] : memref<32xf32, #tpu.memory_space<smem>>
    %388 = vector.broadcast %387 : f32 to vector<1x256xf32>
    %389 = arith.mulf %388, %299 : vector<1x256xf32>
    %390 = arith.addf %386, %389 : vector<1x256xf32>
    %c15_112 = arith.constant 15 : index
    %391 = memref.load %arg3[%c15_112] : memref<32xf32, #tpu.memory_space<smem>>
    %392 = vector.broadcast %391 : f32 to vector<1x256xf32>
    %393 = arith.mulf %392, %319 : vector<1x256xf32>
    %394 = arith.addf %390, %393 : vector<1x256xf32>
    %c11_113 = arith.constant 11 : index
    %c0_114 = arith.constant 0 : index
    %395 = vector.load %arg5[%c11_113, %c0_114] : memref<16x256xf32, #tpu.memory_space<vmem>>, vector<1x256xf32>
    tpu.vector_store %arg5[%c11_113, %c0_114], %394 {strides = array<i32>} : memref<16x256xf32, #tpu.memory_space<vmem>>, vector<1x256xf32>,
    %c4_115 = arith.constant 4 : index
    %396 = memref.load %arg4[%c4_115] : memref<8xf32, #tpu.memory_space<smem>>
    %397 = vector.broadcast %396 : f32 to vector<1x256xf32>
    %c16_116 = arith.constant 16 : index
    %398 = memref.load %arg3[%c16_116] : memref<32xf32, #tpu.memory_space<smem>>
    %399 = vector.broadcast %398 : f32 to vector<1x256xf32>
    %400 = arith.mulf %399, %259 : vector<1x256xf32>
    %401 = arith.addf %397, %400 : vector<1x256xf32>
    %c17_117 = arith.constant 17 : index
    %402 = memref.load %arg3[%c17_117] : memref<32xf32, #tpu.memory_space<smem>>
    %403 = vector.broadcast %402 : f32 to vector<1x256xf32>
    %404 = arith.mulf %403, %279 : vector<1x256xf32>
    %405 = arith.addf %401, %404 : vector<1x256xf32>
    %c18_118 = arith.constant 18 : index
    %406 = memref.load %arg3[%c18_118] : memref<32xf32, #tpu.memory_space<smem>>
    %407 = vector.broadcast %406 : f32 to vector<1x256xf32>
    %408 = arith.mulf %407, %299 : vector<1x256xf32>
    %409 = arith.addf %405, %408 : vector<1x256xf32>
    %c19_119 = arith.constant 19 : index
    %410 = memref.load %arg3[%c19_119] : memref<32xf32, #tpu.memory_space<smem>>
    %411 = vector.broadcast %410 : f32 to vector<1x256xf32>
    %412 = arith.mulf %411, %319 : vector<1x256xf32>
    %413 = arith.addf %409, %412 : vector<1x256xf32>
    %c12_120 = arith.constant 12 : index
    %c0_121 = arith.constant 0 : index
    %414 = vector.load %arg5[%c12_120, %c0_121] : memref<16x256xf32, #tpu.memory_space<vmem>>, vector<1x256xf32>
    tpu.vector_store %arg5[%c12_120, %c0_121], %413 {strides = array<i32>} : memref<16x256xf32, #tpu.memory_space<vmem>>, vector<1x256xf32>,
    %c5_122 = arith.constant 5 : index
    %415 = memref.load %arg4[%c5_122] : memref<8xf32, #tpu.memory_space<smem>>
    %416 = vector.broadcast %415 : f32 to vector<1x256xf32>
    %c20_123 = arith.constant 20 : index
    %417 = memref.load %arg3[%c20_123] : memref<32xf32, #tpu.memory_space<smem>>
    %418 = vector.broadcast %417 : f32 to vector<1x256xf32>
    %419 = arith.mulf %418, %259 : vector<1x256xf32>
    %420 = arith.addf %416, %419 : vector<1x256xf32>
    %c21_124 = arith.constant 21 : index
    %421 = memref.load %arg3[%c21_124] : memref<32xf32, #tpu.memory_space<smem>>
    %422 = vector.broadcast %421 : f32 to vector<1x256xf32>
    %423 = arith.mulf %422, %279 : vector<1x256xf32>
    %424 = arith.addf %420, %423 : vector<1x256xf32>
    %c22_125 = arith.constant 22 : index
    %425 = memref.load %arg3[%c22_125] : memref<32xf32, #tpu.memory_space<smem>>
    %426 = vector.broadcast %425 : f32 to vector<1x256xf32>
    %427 = arith.mulf %426, %299 : vector<1x256xf32>
    %428 = arith.addf %424, %427 : vector<1x256xf32>
    %c23_126 = arith.constant 23 : index
    %429 = memref.load %arg3[%c23_126] : memref<32xf32, #tpu.memory_space<smem>>
    %430 = vector.broadcast %429 : f32 to vector<1x256xf32>
    %431 = arith.mulf %430, %319 : vector<1x256xf32>
    %432 = arith.addf %428, %431 : vector<1x256xf32>
    %c13_127 = arith.constant 13 : index
    %c0_128 = arith.constant 0 : index
    %433 = vector.load %arg5[%c13_127, %c0_128] : memref<16x256xf32, #tpu.memory_space<vmem>>, vector<1x256xf32>
    tpu.vector_store %arg5[%c13_127, %c0_128], %432 {strides = array<i32>} : memref<16x256xf32, #tpu.memory_space<vmem>>, vector<1x256xf32>,
    %c6_129 = arith.constant 6 : index
    %434 = memref.load %arg4[%c6_129] : memref<8xf32, #tpu.memory_space<smem>>
    %435 = vector.broadcast %434 : f32 to vector<1x256xf32>
    %c24_130 = arith.constant 24 : index
    %436 = memref.load %arg3[%c24_130] : memref<32xf32, #tpu.memory_space<smem>>
    %437 = vector.broadcast %436 : f32 to vector<1x256xf32>
    %438 = arith.mulf %437, %259 : vector<1x256xf32>
    %439 = arith.addf %435, %438 : vector<1x256xf32>
    %c25_131 = arith.constant 25 : index
    %440 = memref.load %arg3[%c25_131] : memref<32xf32, #tpu.memory_space<smem>>
    %441 = vector.broadcast %440 : f32 to vector<1x256xf32>
    %442 = arith.mulf %441, %279 : vector<1x256xf32>
    %443 = arith.addf %439, %442 : vector<1x256xf32>
    %c26_132 = arith.constant 26 : index
    %444 = memref.load %arg3[%c26_132] : memref<32xf32, #tpu.memory_space<smem>>
    %445 = vector.broadcast %444 : f32 to vector<1x256xf32>
    %446 = arith.mulf %445, %299 : vector<1x256xf32>
    %447 = arith.addf %443, %446 : vector<1x256xf32>
    %c27_133 = arith.constant 27 : index
    %448 = memref.load %arg3[%c27_133] : memref<32xf32, #tpu.memory_space<smem>>
    %449 = vector.broadcast %448 : f32 to vector<1x256xf32>
    %450 = arith.mulf %449, %319 : vector<1x256xf32>
    %451 = arith.addf %447, %450 : vector<1x256xf32>
    %c14_134 = arith.constant 14 : index
    %c0_135 = arith.constant 0 : index
    %452 = vector.load %arg5[%c14_134, %c0_135] : memref<16x256xf32, #tpu.memory_space<vmem>>, vector<1x256xf32>
    tpu.vector_store %arg5[%c14_134, %c0_135], %451 {strides = array<i32>} : memref<16x256xf32, #tpu.memory_space<vmem>>, vector<1x256xf32>,
    %c7_136 = arith.constant 7 : index
    %453 = memref.load %arg4[%c7_136] : memref<8xf32, #tpu.memory_space<smem>>
    %454 = vector.broadcast %453 : f32 to vector<1x256xf32>
    %c28_137 = arith.constant 28 : index
    %455 = memref.load %arg3[%c28_137] : memref<32xf32, #tpu.memory_space<smem>>
    %456 = vector.broadcast %455 : f32 to vector<1x256xf32>
    %457 = arith.mulf %456, %259 : vector<1x256xf32>
    %458 = arith.addf %454, %457 : vector<1x256xf32>
    %c29_138 = arith.constant 29 : index
    %459 = memref.load %arg3[%c29_138] : memref<32xf32, #tpu.memory_space<smem>>
    %460 = vector.broadcast %459 : f32 to vector<1x256xf32>
    %461 = arith.mulf %460, %279 : vector<1x256xf32>
    %462 = arith.addf %458, %461 : vector<1x256xf32>
    %c30_139 = arith.constant 30 : index
    %463 = memref.load %arg3[%c30_139] : memref<32xf32, #tpu.memory_space<smem>>
    %464 = vector.broadcast %463 : f32 to vector<1x256xf32>
    %465 = arith.mulf %464, %299 : vector<1x256xf32>
    %466 = arith.addf %462, %465 : vector<1x256xf32>
    %c31_140 = arith.constant 31 : index
    %467 = memref.load %arg3[%c31_140] : memref<32xf32, #tpu.memory_space<smem>>
    %468 = vector.broadcast %467 : f32 to vector<1x256xf32>
    %469 = arith.mulf %468, %319 : vector<1x256xf32>
    %470 = arith.addf %466, %469 : vector<1x256xf32>
    %c15_141 = arith.constant 15 : index
    %c0_142 = arith.constant 0 : index
    %471 = vector.load %arg5[%c15_141, %c0_142] : memref<16x256xf32, #tpu.memory_space<vmem>>, vector<1x256xf32>
    tpu.vector_store %arg5[%c15_141, %c0_142], %470 {strides = array<i32>} : memref<16x256xf32, #tpu.memory_space<vmem>>, vector<1x256xf32>,
    return
  }
}

</mosaic_0001>

<llo_original>
// kernel: tpu_custom_call.1
$region0: #{tpu_custom_call.1}
  #allocation0 [shape = 'u32[]', space=smem, size = 0x4, offset = 0x4, fixed_abs, tag = 'smem constant byte address 0x4 - core index']
  #allocation1 [shape = 'u32[144,128]{1,0:T(1,128)}', space=vmem, size = 0x12000, scoped, tag = 'internal scratch']
  %s0 = inlined_call_operand.hbm [shape: f32[8,256], index: 0, kind: input, shape index: {}]
  %s1 = inlined_call_operand.vmem [shape: f32[16], index: 1, kind: input, shape index: {}]
  %s2 = inlined_call_operand.vmem [shape: f32[4], index: 2, kind: input, shape index: {}]
  %s3 = inlined_call_operand.vmem [shape: f32[32], index: 3, kind: input, shape index: {}]
  %s4 = inlined_call_operand.vmem [shape: f32[8], index: 4, kind: input, shape index: {}]
  %s5 = inlined_call_operand.hbm [shape: f32[16,256], index: 5, kind: output, shape index: {}]
  %s6 = sld [smem:[#allocation0]]
  $region50: #{tpu_custom_call.1} parent=0
    _
  %s8 = ssub.s32 1, %s6
  %s9 = scalar_select 0, %s8, %s6
  $region1: #{tpu_custom_call.1} parent=0
    #allocation2 [shape = 'u8[8192]{0}', space=vmem, size = 0x2000, scoped, tag = 'input window, operand 0, single buffered']
    #allocation3 [shape = 's32[1]{0}', space=sflag, size = 0x4, scoped, tag = 'scoped memory for tpu_custom_call.1']
    #allocation4 [shape = 's32[1]{0}', space=sflag, size = 0x4, scoped, tag = 'scoped memory for tpu_custom_call.1']
    #allocation5 [shape = 's32[1]{0}', space=sflag, size = 0x4, scoped, tag = 'scoped memory for tpu_custom_call.1']
    #allocation6 [shape = 'u8[512]{0}', space=smem, size = 0x200, scoped, tag = 'input window, operand 1, single buffered']
    #allocation7 [shape = 'u8[512]{0}', space=smem, size = 0x200, scoped, tag = 'input window, operand 2, single buffered']
    #allocation8 [shape = 's32[1]{0}', space=sflag, size = 0x4, scoped, tag = 'scoped memory for tpu_custom_call.1']
    #allocation9 [shape = 'u8[512]{0}', space=smem, size = 0x200, scoped, tag = 'input window, operand 3, single buffered']
    #allocation10 [shape = 'u8[512]{0}', space=smem, size = 0x200, scoped, tag = 'input window, operand 4, single buffered']
    #allocation11 [shape = 's32[1]{0}', space=sflag, size = 0x4, scoped, tag = 'scoped memory for tpu_custom_call.1']
    #allocation12 [shape = 'u8[16384]{0}', space=vmem, size = 0x4000, scoped, tag = 'output window, operand 0, single buffered']
    %10 = vsyncpa [#allocation3], 0
    %11 = vsyncpa [#allocation5], 0
    %12 = vsyncpa [#allocation8], 0
    %13 = vsyncpa [#allocation11], 0
    %14 = vsyncpa [#allocation4], 0
    // Predicated region
    $region2: #{tpu_custom_call.1} parent=1 // pred_check
      _
    $region3: #{tpu_custom_call.1} parent=1 // pred_check_branch
      %16 = sbr.rel (0) target = $region5
    $region4: #{tpu_custom_call.1} parent=1 // pred_region
      %s18 = ssub.s32 256, 256
      %19 = vsyncadd [#allocation3], %s18
      %s21 = sshll.u32 [#allocation2], 4
      %s22 = int_to_ptr.vmem [resolvable:$true] %s21
      %24 = dma.hbm_to_vmem [thread:$0]  %s0, 256, %s22, [#allocation3]
    $region5: #{tpu_custom_call.1} parent=1 // pred_fallthru
      _
    // Predicated region
    $region6: #{tpu_custom_call.1} parent=1 // pred_check
      _
    $region7: #{tpu_custom_call.1} parent=1 // pred_check_branch
      %26 = sbr.rel (0) target = $region9
    $region8: #{tpu_custom_call.1} parent=1 // pred_region
      %s28 = ssub.s32 16, 16
      %29 = vsyncadd [#allocation5], %s28
      %s31 = sshll.u32 %s1, 4
      %s32 = int_to_ptr.vmem [resolvable:$true] %s31
      %34 = dma.vmem_to_smem %s32, 16, [#allocation6], [#allocation5]
    $region9: #{tpu_custom_call.1} parent=1 // pred_fallthru
      _
    // Predicated region
    $region10: #{tpu_custom_call.1} parent=1 // pred_check
      _
    $region11: #{tpu_custom_call.1} parent=1 // pred_check_branch
      %36 = sbr.rel (0) target = $region13
    $region12: #{tpu_custom_call.1} parent=1 // pred_region
      %s38 = ssub.s32 16, 16
      %39 = vsyncadd [#allocation8], %s38
      %s41 = sshll.u32 %s2, 4
      %s42 = int_to_ptr.vmem [resolvable:$true] %s41
      %44 = dma.vmem_to_smem %s42, 16, [#allocation7], [#allocation8]
    $region13: #{tpu_custom_call.1} parent=1 // pred_fallthru
      _
    // Predicated region
    $region14: #{tpu_custom_call.1} parent=1 // pred_check
      _
    $region15: #{tpu_custom_call.1} parent=1 // pred_check_branch
      %46 = sbr.rel (0) target = $region17
    $region16: #{tpu_custom_call.1} parent=1 // pred_region
      %s48 = ssub.s32 16, 16
      %49 = vsyncadd [#allocation8], %s48
      %s51 = sshll.u32 %s3, 4
      %s52 = int_to_ptr.vmem [resolvable:$true] %s51
      %54 = dma.vmem_to_smem %s52, 16, [#allocation9], [#allocation8]
    $region17: #{tpu_custom_call.1} parent=1 // pred_fallthru
      _
    // Predicated region
    $region18: #{tpu_custom_call.1} parent=1 // pred_check
      _
    $region19: #{tpu_custom_call.1} parent=1 // pred_check_branch
      %56 = sbr.rel (0) target = $region21
    $region20: #{tpu_custom_call.1} parent=1 // pred_region
      %s58 = ssub.s32 16, 16
      %59 = vsyncadd [#allocation11], %s58
      %s61 = sshll.u32 %s4, 4
      %s62 = int_to_ptr.vmem [resolvable:$true] %s61
      %64 = dma.vmem_to_smem %s62, 16, [#allocation10], [#allocation11]
    $region21: #{tpu_custom_call.1} parent=1 // pred_fallthru
      _
    // Predicated region
    $region22: #{tpu_custom_call.1} parent=1 // pred_check
      _
    $region23: #{tpu_custom_call.1} parent=1 // pred_check_branch
      %66 = sbr.rel (0) target = $region25
    $region24: #{tpu_custom_call.1} parent=1 // pred_region
      %67 = dma.done [#allocation3], 256
    $region25: #{tpu_custom_call.1} parent=1 // pred_fallthru
      _
    // Predicated region
    $region26: #{tpu_custom_call.1} parent=1 // pred_check
      _
    $region27: #{tpu_custom_call.1} parent=1 // pred_check_branch
      %69 = sbr.rel (0) target = $region29
    $region28: #{tpu_custom_call.1} parent=1 // pred_region
      %70 = dma.done [#allocation5], 16
    $region29: #{tpu_custom_call.1} parent=1 // pred_fallthru
      _
    // Predicated region
    $region30: #{tpu_custom_call.1} parent=1 // pred_check
      _
    $region31: #{tpu_custom_call.1} parent=1 // pred_check_branch
      %72 = sbr.rel (0) target = $region33
    $region32: #{tpu_custom_call.1} parent=1 // pred_region
      %73 = dma.done [#allocation8], 16
    $region33: #{tpu_custom_call.1} parent=1 // pred_fallthru
      _
    // Predicated region
    $region34: #{tpu_custom_call.1} parent=1 // pred_check
      _
    $region35: #{tpu_custom_call.1} parent=1 // pred_check_branch
      %75 = sbr.rel (0) target = $region37
    $region36: #{tpu_custom_call.1} parent=1 // pred_region
      %76 = dma.done [#allocation8], 16
    $region37: #{tpu_custom_call.1} parent=1 // pred_fallthru
      _
    // Predicated region
    $region38: #{tpu_custom_call.1} parent=1 // pred_check
      _
    $region39: #{tpu_custom_call.1} parent=1 // pred_check_branch
      %78 = sbr.rel (0) target = $region41
    $region40: #{tpu_custom_call.1} parent=1 // pred_region
      %79 = dma.done [#allocation11], 16
    $region41: #{tpu_custom_call.1} parent=1 // pred_fallthru
      _
    %80 = sfence
    %v81 = vld [vmem:[#allocation2] ss:$8 sm:$0x3]
    %s82 = scalar_lea.vmem [#allocation2], 1
    %v83 = vld [vmem:[%s82] ss:$8 sm:$0x3]
    %s84 = scalar_lea.vmem [#allocation2], 2
    %v85 = vld [vmem:[%s84] ss:$8 sm:$0x3]
    %s86 = scalar_lea.vmem [#allocation2], 3
    %v87 = vld [vmem:[%s86] ss:$8 sm:$0x3]
    %s88 = sld [smem:[#allocation7]]
    %v89 = vstv %s88
    %s90 = sld [smem:[#allocation6]]
    %v91 = vstv %s90
    %v92 = vmul.f32 %v91, %v81
    %v93 = vadd.f32 %v89, %v92
    %s94 = sld [smem:[#allocation6 + $0x1]]
    %v95 = vstv %s94
    %v96 = vmul.f32 %v95, %v83
    %v97 = vadd.f32 %v93, %v96
    %s98 = sld [smem:[#allocation6 + $0x2]]
    %v99 = vstv %s98
    %v100 = vmul.f32 %v99, %v85
    %v101 = vadd.f32 %v97, %v100
    %s102 = sld [smem:[#allocation6 + $0x3]]
    %v103 = vstv %s102
    %v104 = vmul.f32 %v103, %v87
    %v105 = vadd.f32 %v101, %v104
    %v106 = vmax.f32 %v105, 0.0
    %s107 = sld [smem:[#allocation7 + $0x1]]
    %v108 = vstv %s107
    %s109 = sld [smem:[#allocation6 + $0x4]]
    %v110 = vstv %s109
    %v111 = vmul.f32 %v110, %v81
    %v112 = vadd.f32 %v108, %v111
    %s113 = sld [smem:[#allocation6 + $0x5]]
    %v114 = vstv %s113
    %v115 = vmul.f32 %v114, %v83
    %v116 = vadd.f32 %v112, %v115
    %s117 = sld [smem:[#allocation6 + $0x6]]
    %v118 = vstv %s117
    %v119 = vmul.f32 %v118, %v85
    %v120 = vadd.f32 %v116, %v119
    %s121 = sld [smem:[#allocation6 + $0x7]]
    %v122 = vstv %s121
    %v123 = vmul.f32 %v122, %v87
    %v124 = vadd.f32 %v120, %v123
    %v125 = vmax.f32 %v124, 0.0
    %s126 = sld [smem:[#allocation7 + $0x2]]
    %v127 = vstv %s126
    %s128 = sld [smem:[#allocation6 + $0x8]]
    %v129 = vstv %s128
    %v130 = vmul.f32 %v129, %v81
    %v131 = vadd.f32 %v127, %v130
    %s132 = sld [smem:[#allocation6 + $0x9]]
    %v133 = vstv %s132
    %v134 = vmul.f32 %v133, %v83
    %v135 = vadd.f32 %v131, %v134
    %s136 = sld [smem:[#allocation6 + $0xa]]
    %v137 = vstv %s136
    %v138 = vmul.f32 %v137, %v85
    %v139 = vadd.f32 %v135, %v138
    %s140 = sld [smem:[#allocation6 + $0xb]]
    %v141 = vstv %s140
    %v142 = vmul.f32 %v141, %v87
    %v143 = vadd.f32 %v139, %v142
    %v144 = vmax.f32 %v143, 0.0
    %s145 = sld [smem:[#allocation7 + $0x3]]
    %v146 = vstv %s145
    %s147 = sld [smem:[#allocation6 + $0xc]]
    %v148 = vstv %s147
    %v149 = vmul.f32 %v148, %v81
    %v150 = vadd.f32 %v146, %v149
    %s151 = sld [smem:[#allocation6 + $0xd]]
    %v152 = vstv %s151
    %v153 = vmul.f32 %v152, %v83
    %v154 = vadd.f32 %v150, %v153
    %s155 = sld [smem:[#allocation6 + $0xe]]
    %v156 = vstv %s155
    %v157 = vmul.f32 %v156, %v85
    %v158 = vadd.f32 %v154, %v157
    %s159 = sld [smem:[#allocation6 + $0xf]]
    %v160 = vstv %s159
    %v161 = vmul.f32 %v160, %v87
    %v162 = vadd.f32 %v158, %v161
    %v163 = vmax.f32 %v162, 0.0
    %s164 = sld [smem:[#allocation10]]
    %v165 = vstv %s164
    %s166 = sld [smem:[#allocation9]]
    %v167 = vstv %s166
    %v168 = vmul.f32 %v167, %v106
    %v169 = vadd.f32 %v165, %v168
    %s170 = sld [smem:[#allocation9 + $0x1]]
    %v171 = vstv %s170
    %v172 = vmul.f32 %v171, %v125
    %v173 = vadd.f32 %v169, %v172
    %s174 = sld [smem:[#allocation9 + $0x2]]
    %v175 = vstv %s174
    %v176 = vmul.f32 %v175, %v144
    %v177 = vadd.f32 %v173, %v176
    %s178 = sld [smem:[#allocation9 + $0x3]]
    %v179 = vstv %s178
    %v180 = vmul.f32 %v179, %v163
    %v181 = vadd.f32 %v177, %v180
    %v182 = vlaneseq
    %vm183 = vcmp.ge.s32.totalorder %v182, 0
    %vm184 = vcmp.lt.s32.totalorder %v182, 256
    %vm185 = vmand %vm183, %vm184
    %186 = vst.msk [vmem:[#allocation12] ss:$8 sm:$0x3] %vm185, %v181
    %187 = vst.msk [vmem:[#allocation12] ss:$8 sm:$0x0] %vm185, %v181
    %s188 = sld [smem:[#allocation10 + $0x1]]
    %v189 = vstv %s188
    %s190 = sld [smem:[#allocation9 + $0x4]]
    %v191 = vstv %s190
    %v192 = vmul.f32 %v191, %v106
    %v193 = vadd.f32 %v189, %v192
    %s194 = sld [smem:[#allocation9 + $0x5]]
    %v195 = vstv %s194
    %v196 = vmul.f32 %v195, %v125
    %v197 = vadd.f32 %v193, %v196
    %s198 = sld [smem:[#allocation9 + $0x6]]
    %v199 = vstv %s198
    %v200 = vmul.f32 %v199, %v144
    %v201 = vadd.f32 %v197, %v200
    %s202 = sld [smem:[#allocation9 + $0x7]]
    %v203 = vstv %s202
    %v204 = vmul.f32 %v203, %v163
    %v205 = vadd.f32 %v201, %v204
    %s206 = scalar_lea.vmem [#allocation12], 1
    %207 = vst.msk [vmem:[%s206] ss:$8 sm:$0x3] %vm185, %v205
    %208 = vst.msk [vmem:[%s206] ss:$8 sm:$0x0] %vm185, %v205
    %s209 = sld [smem:[#allocation10 + $0x2]]
    %v210 = vstv %s209
    %s211 = sld [smem:[#allocation9 + $0x8]]
    %v212 = vstv %s211
    %v213 = vmul.f32 %v212, %v106
    %v214 = vadd.f32 %v210, %v213
    %s215 = sld [smem:[#allocation9 + $0x9]]
    %v216 = vstv %s215
    %v217 = vmul.f32 %v216, %v125
    %v218 = vadd.f32 %v214, %v217
    %s219 = sld [smem:[#allocation9 + $0xa]]
    %v220 = vstv %s219
    %v221 = vmul.f32 %v220, %v144
    %v222 = vadd.f32 %v218, %v221
    %s223 = sld [smem:[#allocation9 + $0xb]]
    %v224 = vstv %s223
    %v225 = vmul.f32 %v224, %v163
    %v226 = vadd.f32 %v222, %v225
    %s227 = scalar_lea.vmem [#allocation12], 2
    %228 = vst.msk [vmem:[%s227] ss:$8 sm:$0x3] %vm185, %v226
    %229 = vst.msk [vmem:[%s227] ss:$8 sm:$0x0] %vm185, %v226
    %s230 = sld [smem:[#allocation10 + $0x3]]
    %v231 = vstv %s230
    %s232 = sld [smem:[#allocation9 + $0xc]]
    %v233 = vstv %s232
    %v234 = vmul.f32 %v233, %v106
    %v235 = vadd.f32 %v231, %v234
    %s236 = sld [smem:[#allocation9 + $0xd]]
    %v237 = vstv %s236
    %v238 = vmul.f32 %v237, %v125
    %v239 = vadd.f32 %v235, %v238
    %s240 = sld [smem:[#allocation9 + $0xe]]
    %v241 = vstv %s240
    %v242 = vmul.f32 %v241, %v144
    %v243 = vadd.f32 %v239, %v242
    %s244 = sld [smem:[#allocation9 + $0xf]]
    %v245 = vstv %s244
    %v246 = vmul.f32 %v245, %v163
    %v247 = vadd.f32 %v243, %v246
    %s248 = scalar_lea.vmem [#allocation12], 3
    %249 = vst.msk [vmem:[%s248] ss:$8 sm:$0x3] %vm185, %v247
    %250 = vst.msk [vmem:[%s248] ss:$8 sm:$0x0] %vm185, %v247
    %s251 = sld [smem:[#allocation10 + $0x4]]
    %v252 = vstv %s251
    %s253 = sld [smem:[#allocation9 + $0x10]]
    %v254 = vstv %s253
    %v255 = vmul.f32 %v254, %v106
    %v256 = vadd.f32 %v252, %v255
    %s257 = sld [smem:[#allocation9 + $0x11]]
    %v258 = vstv %s257
    %v259 = vmul.f32 %v258, %v125
    %v260 = vadd.f32 %v256, %v259
    %s261 = sld [smem:[#allocation9 + $0x12]]
    %v262 = vstv %s261
    %v263 = vmul.f32 %v262, %v144
    %v264 = vadd.f32 %v260, %v263
    %s265 = sld [smem:[#allocation9 + $0x13]]
    %v266 = vstv %s265
    %v267 = vmul.f32 %v266, %v163
    %v268 = vadd.f32 %v264, %v267
    %s269 = scalar_lea.vmem [#allocation12], 4
    %270 = vst.msk [vmem:[%s269] ss:$8 sm:$0x3] %vm185, %v268
    %271 = vst.msk [vmem:[%s269] ss:$8 sm:$0x0] %vm185, %v268
    %s272 = sld [smem:[#allocation10 + $0x5]]
    %v273 = vstv %s272
    %s274 = sld [smem:[#allocation9 + $0x14]]
    %v275 = vstv %s274
    %v276 = vmul.f32 %v275, %v106
    %v277 = vadd.f32 %v273, %v276
    %s278 = sld [smem:[#allocation9 + $0x15]]
    %v279 = vstv %s278
    %v280 = vmul.f32 %v279, %v125
    %v281 = vadd.f32 %v277, %v280
    %s282 = sld [smem:[#allocation9 + $0x16]]
    %v283 = vstv %s282
    %v284 = vmul.f32 %v283, %v144
    %v285 = vadd.f32 %v281, %v284
    %s286 = sld [smem:[#allocation9 + $0x17]]
    %v287 = vstv %s286
    %v288 = vmul.f32 %v287, %v163
    %v289 = vadd.f32 %v285, %v288
    %s290 = scalar_lea.vmem [#allocation12], 5
    %291 = vst.msk [vmem:[%s290] ss:$8 sm:$0x3] %vm185, %v289
    %292 = vst.msk [vmem:[%s290] ss:$8 sm:$0x0] %vm185, %v289
    %s293 = sld [smem:[#allocation10 + $0x6]]
    %v294 = vstv %s293
    %s295 = sld [smem:[#allocation9 + $0x18]]
    %v296 = vstv %s295
    %v297 = vmul.f32 %v296, %v106
    %v298 = vadd.f32 %v294, %v297
    %s299 = sld [smem:[#allocation9 + $0x19]]
    %v300 = vstv %s299
    %v301 = vmul.f32 %v300, %v125
    %v302 = vadd.f32 %v298, %v301
    %s303 = sld [smem:[#allocation9 + $0x1a]]
    %v304 = vstv %s303
    %v305 = vmul.f32 %v304, %v144
    %v306 = vadd.f32 %v302, %v305
    %s307 = sld [smem:[#allocation9 + $0x1b]]
    %v308 = vstv %s307
    %v309 = vmul.f32 %v308, %v163
    %v310 = vadd.f32 %v306, %v309
    %s311 = scalar_lea.vmem [#allocation12], 6
    %312 = vst.msk [vmem:[%s311] ss:$8 sm:$0x3] %vm185, %v310
    %313 = vst.msk [vmem:[%s311] ss:$8 sm:$0x0] %vm185, %v310
    %s314 = sld [smem:[#allocation10 + $0x7]]
    %v315 = vstv %s314
    %s316 = sld [smem:[#allocation9 + $0x1c]]
    %v317 = vstv %s316
    %v318 = vmul.f32 %v317, %v106
    %v319 = vadd.f32 %v315, %v318
    %s320 = sld [smem:[#allocation9 + $0x1d]]
    %v321 = vstv %s320
    %v322 = vmul.f32 %v321, %v125
    %v323 = vadd.f32 %v319, %v322
    %s324 = sld [smem:[#allocation9 + $0x1e]]
    %v325 = vstv %s324
    %v326 = vmul.f32 %v325, %v144
    %v327 = vadd.f32 %v323, %v326
    %s328 = sld [smem:[#allocation9 + $0x1f]]
    %v329 = vstv %s328
    %v330 = vmul.f32 %v329, %v163
    %v331 = vadd.f32 %v327, %v330
    %s332 = scalar_lea.vmem [#allocation12], 7
    %333 = vst.msk [vmem:[%s332] ss:$8 sm:$0x3] %vm185, %v331
    %334 = vst.msk [vmem:[%s332] ss:$8 sm:$0x0] %vm185, %v331
    %s335 = scalar_lea.vmem [#allocation2], 4
    %v336 = vld [vmem:[%s335] ss:$8 sm:$0x3]
    %s337 = scalar_lea.vmem [#allocation2], 5
    %v338 = vld [vmem:[%s337] ss:$8 sm:$0x3]
    %s339 = scalar_lea.vmem [#allocation2], 6
    %v340 = vld [vmem:[%s339] ss:$8 sm:$0x3]
    %s341 = scalar_lea.vmem [#allocation2], 7
    %v342 = vld [vmem:[%s341] ss:$8 sm:$0x3]
    %s343 = sld [smem:[#allocation7]]
    %v344 = vstv %s343
    %s345 = sld [smem:[#allocation6]]
    %v346 = vstv %s345
    %v347 = vmul.f32 %v346, %v336
    %v348 = vadd.f32 %v344, %v347
    %s349 = sld [smem:[#allocation6 + $0x1]]
    %v350 = vstv %s349
    %v351 = vmul.f32 %v350, %v338
    %v352 = vadd.f32 %v348, %v351
    %s353 = sld [smem:[#allocation6 + $0x2]]
    %v354 = vstv %s353
    %v355 = vmul.f32 %v354, %v340
    %v356 = vadd.f32 %v352, %v355
    %s357 = sld [smem:[#allocation6 + $0x3]]
    %v358 = vstv %s357
    %v359 = vmul.f32 %v358, %v342
    %v360 = vadd.f32 %v356, %v359
    %v361 = vmax.f32 %v360, 0.0
    %s362 = sld [smem:[#allocation7 + $0x1]]
    %v363 = vstv %s362
    %s364 = sld [smem:[#allocation6 + $0x4]]
    %v365 = vstv %s364
    %v366 = vmul.f32 %v365, %v336
    %v367 = vadd.f32 %v363, %v366
    %s368 = sld [smem:[#allocation6 + $0x5]]
    %v369 = vstv %s368
    %v370 = vmul.f32 %v369, %v338
    %v371 = vadd.f32 %v367, %v370
    %s372 = sld [smem:[#allocation6 + $0x6]]
    %v373 = vstv %s372
    %v374 = vmul.f32 %v373, %v340
    %v375 = vadd.f32 %v371, %v374
    %s376 = sld [smem:[#allocation6 + $0x7]]
    %v377 = vstv %s376
    %v378 = vmul.f32 %v377, %v342
    %v379 = vadd.f32 %v375, %v378
    %v380 = vmax.f32 %v379, 0.0
    %s381 = sld [smem:[#allocation7 + $0x2]]
    %v382 = vstv %s381
    %s383 = sld [smem:[#allocation6 + $0x8]]
    %v384 = vstv %s383
    %v385 = vmul.f32 %v384, %v336
    %v386 = vadd.f32 %v382, %v385
    %s387 = sld [smem:[#allocation6 + $0x9]]
    %v388 = vstv %s387
    %v389 = vmul.f32 %v388, %v338
    %v390 = vadd.f32 %v386, %v389
    %s391 = sld [smem:[#allocation6 + $0xa]]
    %v392 = vstv %s391
    %v393 = vmul.f32 %v392, %v340
    %v394 = vadd.f32 %v390, %v393
    %s395 = sld [smem:[#allocation6 + $0xb]]
    %v396 = vstv %s395
    %v397 = vmul.f32 %v396, %v342
    %v398 = vadd.f32 %v394, %v397
    %v399 = vmax.f32 %v398, 0.0
    %s400 = sld [smem:[#allocation7 + $0x3]]
    %v401 = vstv %s400
    %s402 = sld [smem:[#allocation6 + $0xc]]
    %v403 = vstv %s402
    %v404 = vmul.f32 %v403, %v336
    %v405 = vadd.f32 %v401, %v404
    %s406 = sld [smem:[#allocation6 + $0xd]]
    %v407 = vstv %s406
    %v408 = vmul.f32 %v407, %v338
    %v409 = vadd.f32 %v405, %v408
    %s410 = sld [smem:[#allocation6 + $0xe]]
    %v411 = vstv %s410
    %v412 = vmul.f32 %v411, %v340
    %v413 = vadd.f32 %v409, %v412
    %s414 = sld [smem:[#allocation6 + $0xf]]
    %v415 = vstv %s414
    %v416 = vmul.f32 %v415, %v342
    %v417 = vadd.f32 %v413, %v416
    %v418 = vmax.f32 %v417, 0.0
    %s419 = sld [smem:[#allocation10]]
    %v420 = vstv %s419
    %s421 = sld [smem:[#allocation9]]
    %v422 = vstv %s421
    %v423 = vmul.f32 %v422, %v361
    %v424 = vadd.f32 %v420, %v423
    %s425 = sld [smem:[#allocation9 + $0x1]]
    %v426 = vstv %s425
    %v427 = vmul.f32 %v426, %v380
    %v428 = vadd.f32 %v424, %v427
    %s429 = sld [smem:[#allocation9 + $0x2]]
    %v430 = vstv %s429
    %v431 = vmul.f32 %v430, %v399
    %v432 = vadd.f32 %v428, %v431
    %s433 = sld [smem:[#allocation9 + $0x3]]
    %v434 = vstv %s433
    %v435 = vmul.f32 %v434, %v418
    %v436 = vadd.f32 %v432, %v435
    %s437 = scalar_lea.vmem [#allocation12], 16
    %438 = vst.msk [vmem:[%s437] ss:$8 sm:$0x3] %vm185, %v436
    %439 = vst.msk [vmem:[%s437] ss:$8 sm:$0x0] %vm185, %v436
    %s440 = sld [smem:[#allocation10 + $0x1]]
    %v441 = vstv %s440
    %s442 = sld [smem:[#allocation9 + $0x4]]
    %v443 = vstv %s442
    %v444 = vmul.f32 %v443, %v361
    %v445 = vadd.f32 %v441, %v444
    %s446 = sld [smem:[#allocation9 + $0x5]]
    %v447 = vstv %s446
    %v448 = vmul.f32 %v447, %v380
    %v449 = vadd.f32 %v445, %v448
    %s450 = sld [smem:[#allocation9 + $0x6]]
    %v451 = vstv %s450
    %v452 = vmul.f32 %v451, %v399
    %v453 = vadd.f32 %v449, %v452
    %s454 = sld [smem:[#allocation9 + $0x7]]
    %v455 = vstv %s454
    %v456 = vmul.f32 %v455, %v418
    %v457 = vadd.f32 %v453, %v456
    %s458 = scalar_lea.vmem [#allocation12], 17
    %459 = vst.msk [vmem:[%s458] ss:$8 sm:$0x3] %vm185, %v457
    %460 = vst.msk [vmem:[%s458] ss:$8 sm:$0x0] %vm185, %v457
    %s461 = sld [smem:[#allocation10 + $0x2]]
    %v462 = vstv %s461
    %s463 = sld [smem:[#allocation9 + $0x8]]
    %v464 = vstv %s463
    %v465 = vmul.f32 %v464, %v361
    %v466 = vadd.f32 %v462, %v465
    %s467 = sld [smem:[#allocation9 + $0x9]]
    %v468 = vstv %s467
    %v469 = vmul.f32 %v468, %v380
    %v470 = vadd.f32 %v466, %v469
    %s471 = sld [smem:[#allocation9 + $0xa]]
    %v472 = vstv %s471
    %v473 = vmul.f32 %v472, %v399
    %v474 = vadd.f32 %v470, %v473
    %s475 = sld [smem:[#allocation9 + $0xb]]
    %v476 = vstv %s475
    %v477 = vmul.f32 %v476, %v418
    %v478 = vadd.f32 %v474, %v477
    %s479 = scalar_lea.vmem [#allocation12], 18
    %480 = vst.msk [vmem:[%s479] ss:$8 sm:$0x3] %vm185, %v478
    %481 = vst.msk [vmem:[%s479] ss:$8 sm:$0x0] %vm185, %v478
    %s482 = sld [smem:[#allocation10 + $0x3]]
    %v483 = vstv %s482
    %s484 = sld [smem:[#allocation9 + $0xc]]
    %v485 = vstv %s484
    %v486 = vmul.f32 %v485, %v361
    %v487 = vadd.f32 %v483, %v486
    %s488 = sld [smem:[#allocation9 + $0xd]]
    %v489 = vstv %s488
    %v490 = vmul.f32 %v489, %v380
    %v491 = vadd.f32 %v487, %v490
    %s492 = sld [smem:[#allocation9 + $0xe]]
    %v493 = vstv %s492
    %v494 = vmul.f32 %v493, %v399
    %v495 = vadd.f32 %v491, %v494
    %s496 = sld [smem:[#allocation9 + $0xf]]
    %v497 = vstv %s496
    %v498 = vmul.f32 %v497, %v418
    %v499 = vadd.f32 %v495, %v498
    %s500 = scalar_lea.vmem [#allocation12], 19
    %501 = vst.msk [vmem:[%s500] ss:$8 sm:$0x3] %vm185, %v499
    %502 = vst.msk [vmem:[%s500] ss:$8 sm:$0x0] %vm185, %v499
    %s503 = sld [smem:[#allocation10 + $0x4]]
    %v504 = vstv %s503
    %s505 = sld [smem:[#allocation9 + $0x10]]
    %v506 = vstv %s505
    %v507 = vmul.f32 %v506, %v361
    %v508 = vadd.f32 %v504, %v507
    %s509 = sld [smem:[#allocation9 + $0x11]]
    %v510 = vstv %s509
    %v511 = vmul.f32 %v510, %v380
    %v512 = vadd.f32 %v508, %v511
    %s513 = sld [smem:[#allocation9 + $0x12]]
    %v514 = vstv %s513
    %v515 = vmul.f32 %v514, %v399
    %v516 = vadd.f32 %v512, %v515
    %s517 = sld [smem:[#allocation9 + $0x13]]
    %v518 = vstv %s517
    %v519 = vmul.f32 %v518, %v418
    %v520 = vadd.f32 %v516, %v519
    %s521 = scalar_lea.vmem [#allocation12], 20
    %522 = vst.msk [vmem:[%s521] ss:$8 sm:$0x3] %vm185, %v520
    %523 = vst.msk [vmem:[%s521] ss:$8 sm:$0x0] %vm185, %v520
    %s524 = sld [smem:[#allocation10 + $0x5]]
    %v525 = vstv %s524
    %s526 = sld [smem:[#allocation9 + $0x14]]
    %v527 = vstv %s526
    %v528 = vmul.f32 %v527, %v361
    %v529 = vadd.f32 %v525, %v528
    %s530 = sld [smem:[#allocation9 + $0x15]]
    %v531 = vstv %s530
    %v532 = vmul.f32 %v531, %v380
    %v533 = vadd.f32 %v529, %v532
    %s534 = sld [smem:[#allocation9 + $0x16]]
    %v535 = vstv %s534
    %v536 = vmul.f32 %v535, %v399
    %v537 = vadd.f32 %v533, %v536
    %s538 = sld [smem:[#allocation9 + $0x17]]
    %v539 = vstv %s538
    %v540 = vmul.f32 %v539, %v418
    %v541 = vadd.f32 %v537, %v540
    %s542 = scalar_lea.vmem [#allocation12], 21
    %543 = vst.msk [vmem:[%s542] ss:$8 sm:$0x3] %vm185, %v541
    %544 = vst.msk [vmem:[%s542] ss:$8 sm:$0x0] %vm185, %v541
    %s545 = sld [smem:[#allocation10 + $0x6]]
    %v546 = vstv %s545
    %s547 = sld [smem:[#allocation9 + $0x18]]
    %v548 = vstv %s547
    %v549 = vmul.f32 %v548, %v361
    %v550 = vadd.f32 %v546, %v549
    %s551 = sld [smem:[#allocation9 + $0x19]]
    %v552 = vstv %s551
    %v553 = vmul.f32 %v552, %v380
    %v554 = vadd.f32 %v550, %v553
    %s555 = sld [smem:[#allocation9 + $0x1a]]
    %v556 = vstv %s555
    %v557 = vmul.f32 %v556, %v399
    %v558 = vadd.f32 %v554, %v557
    %s559 = sld [smem:[#allocation9 + $0x1b]]
    %v560 = vstv %s559
    %v561 = vmul.f32 %v560, %v418
    %v562 = vadd.f32 %v558, %v561
    %s563 = scalar_lea.vmem [#allocation12], 22
    %564 = vst.msk [vmem:[%s563] ss:$8 sm:$0x3] %vm185, %v562
    %565 = vst.msk [vmem:[%s563] ss:$8 sm:$0x0] %vm185, %v562
    %s566 = sld [smem:[#allocation10 + $0x7]]
    %v567 = vstv %s566
    %s568 = sld [smem:[#allocation9 + $0x1c]]
    %v569 = vstv %s568
    %v570 = vmul.f32 %v569, %v361
    %v571 = vadd.f32 %v567, %v570
    %s572 = sld [smem:[#allocation9 + $0x1d]]
    %v573 = vstv %s572
    %v574 = vmul.f32 %v573, %v380
    %v575 = vadd.f32 %v571, %v574
    %s576 = sld [smem:[#allocation9 + $0x1e]]
    %v577 = vstv %s576
    %v578 = vmul.f32 %v577, %v399
    %v579 = vadd.f32 %v575, %v578
    %s580 = sld [smem:[#allocation9 + $0x1f]]
    %v581 = vstv %s580
    %v582 = vmul.f32 %v581, %v418
    %v583 = vadd.f32 %v579, %v582
    %s584 = scalar_lea.vmem [#allocation12], 23
    %585 = vst.msk [vmem:[%s584] ss:$8 sm:$0x3] %vm185, %v583
    %586 = vst.msk [vmem:[%s584] ss:$8 sm:$0x0] %vm185, %v583
    // Predicated region
    $region42: #{tpu_custom_call.1} parent=1 // pred_check
      _
    $region43: #{tpu_custom_call.1} parent=1 // pred_check_branch
      %588 = sbr.rel (0) target = $region45
    $region44: #{tpu_custom_call.1} parent=1 // pred_region
      %s590 = ssub.s32 512, 512
      %591 = vsyncadd [#allocation4], %s590
      %s592 = sshll.u32 [#allocation12], 4
      %s593 = int_to_ptr.vmem [resolvable:$true] %s592
      %598 = dma.vmem_to_hbm [thread:$0]  %s593, 512, %s5, [#allocation4], 256, 256, 16
    $region45: #{tpu_custom_call.1} parent=1 // pred_fallthru
      _
    // Predicated region
    $region46: #{tpu_custom_call.1} parent=1 // pred_check
      _
    $region47: #{tpu_custom_call.1} parent=1 // pred_check_branch
      %600 = sbr.rel (0) target = $region49
    $region48: #{tpu_custom_call.1} parent=1 // pred_region
      %601 = dma.done [#allocation4], 512
    $region49: #{tpu_custom_call.1} parent=1 // pred_fallthru
      _
    %602 = vsyncpa [#allocation3], 1
    %603 = vsyncpa [#allocation4], 1
    %604 = vsyncpa [#allocation5], 1
    %605 = vsyncpa [#allocation8], 1
    %606 = vsyncpa [#allocation11], 1

</llo_original>
